<compile_context>
chip_gen: v5e
topology: v5e:2x2
jax: 0.10.0
libtpu: 0.0.40
codegen_flags: <defaults>
</compile_context>

<pallas_src>
import functools

import jax
import jax.numpy as jnp
from jax import lax
from jax.experimental import pallas as pl
from jax.experimental.pallas import tpu as pltpu


# --------------------------------------------------------------------------
# hardware / tiling helpers
# --------------------------------------------------------------------------
def _device_kind():
    try:
        return jax.devices()[0].device_kind.lower()
    except Exception:
        return ""


def _is_v5e():
    kind = _device_kind()
    return ("v5 lite" in kind) or ("v5e" in kind) or ("v5litepod" in kind)


@functools.lru_cache(maxsize=None)
def _vmem_budget_bytes():
    """Per-generation VMEM budget with ~15% headroom for compiler scratch."""
    cap = 0
    try:
        info = pltpu.get_tpu_info()
        cap = int(getattr(info, "vmem_capacity_bytes", 0) or 0)
    except Exception:
        cap = 0
    if cap <= 0:
        cap = 64 << 20  # conservative fallback = v7x physical VMEM per TensorCore
    return int(cap * 0.85)


def _pick_row_tile(n):
    """Tile for a row-wise-independent axis. Returns (tile, num_tiles).

    Prefers an exact 512/256/128 divisor; otherwise uses a pl.cdiv grid with a
    padded last tile (safe: every computation here is per-row independent).
    """
    for t in (512, 256, 128):
        if n >= t and n % t == 0:
            return t, n // t
    if n > 128:
        cands = [t for t in (512, 256, 128) if t <= n]
        best = min(cands, key=lambda t: (pl.cdiv(n, t) * t - n, -t))
        return best, pl.cdiv(n, best)
    return n, 1


def _pick_exact_tile(n):
    """Tile for a reduction axis (padding would corrupt results). Exact or full."""
    for t in (512, 256, 128):
        if n >= t and n % t == 0:
            return t, n // t
    return n, 1


def _choose_q_tile(lq, per_row_bytes, fixed_bytes, budget, prefer_small=False):
    """Largest q tile whose VMEM estimate fits `budget` (least padding on ties)."""
    top = 256 if prefer_small else 512
    cands = []
    if lq <= top:
        cands.append(lq)
    for t in (512, 256, 128):
        if t <= min(lq, top) and t not in cands:
            cands.append(t)
    fitting = [t for t in cands if fixed_bytes + t * per_row_bytes <= budget]
    if not fitting:
        return cands[-1]
    return min(fitting, key=lambda t: (pl.cdiv(lq, t) * t - lq, -t))


_NEG_INF = -0.7 * float(jnp.finfo(jnp.float32).max)


# --------------------------------------------------------------------------
# linear projection kernel: y = x @ W + b   (rows x dout tiled)
# --------------------------------------------------------------------------
def _linear_kernel(x_ref, w_ref, b_ref, y_ref):
    y = jnp.dot(x_ref[...], w_ref[...], preferred_element_type=jnp.float32)
    y_ref[...] = (y + b_ref[...].astype(jnp.float32)).astype(y_ref.dtype)


def linear(x, w, b):
    """x: [..., Din], w: [Din, Dout], b: [Dout] -> [..., Dout]."""
    orig_shape = x.shape
    din = orig_shape[-1]
    dout = w.shape[1]
    rows = 1
    for s in orig_shape[:-1]:
        rows *= s
    x2 = x.reshape(rows, din)

    tr, gr = _pick_row_tile(rows)
    tn, gn = _pick_exact_tile(dout)

    esz = jnp.dtype(x.dtype).itemsize
    est = (2 * tr * din * esz + 2 * din * tn * esz + 2 * tn * esz
           + 2 * tr * tn * esz + tr * tn * 4 + (2 << 20))
    budget = _vmem_budget_bytes()
    vmem_limit = int(min(budget, max(est, 32 << 20)))

    y = pl.pallas_call(
        _linear_kernel,
        out_shape=jax.ShapeDtypeStruct((rows, dout), x.dtype),
        grid_spec=pltpu.PrefetchScalarGridSpec(
            num_scalar_prefetch=0,
            grid=(gr, gn),
            in_specs=[
                pl.BlockSpec((tr, din), lambda i, j: (i, 0)),
                pl.BlockSpec((din, tn), lambda i, j: (0, j)),
                pl.BlockSpec((1, tn), lambda i, j: (0, j)),
            ],
            out_specs=pl.BlockSpec((tr, tn), lambda i, j: (i, j)),
        ),
        compiler_params=pltpu.CompilerParams(
            dimension_semantics=("parallel", "parallel"),
            vmem_limit_bytes=vmem_limit,
        ),
    )(x2, w, b.reshape(1, dout))
    return y.reshape(orig_shape[:-1] + (dout,))


# --------------------------------------------------------------------------
# ScaledDotProductAttention kernels
# --------------------------------------------------------------------------
def _sdpa_body(q_ref, k_ref, v_ref, m_ref, ctx_ref, attn_ref, *, scale, bf16_exp):
    q = q_ref[0]            # (TQ, D), input dtype
    k = k_ref[0]            # (Lk, D)
    v = v_ref[0]            # (Lk, Dv)

    # Fold the scale into q (TQ*D VPU op) instead of scaling the TQ*Lk scores.
    if scale is not None:
        q = q * jnp.asarray(scale, dtype=q.dtype)

    # scores = q @ k^T without materializing k.T (contract last dims), f32 accumulate.
    s = lax.dot_general(q, k, dimension_numbers=(((1,), (1,)), ((), ())),
                        preferred_element_type=jnp.float32)

    if m_ref is not None:
        # masked_fill_(attn_mask, -inf); mask arrives as int8, nonzero => masked.
        s = jnp.where(m_ref[0] != 0, -jnp.inf, s)

    # softmax over the key dim (f32 math).
    # NOTE: a fully-masked row yields NaN, exactly like the PyTorch reference.
    m = jnp.max(s, axis=-1, keepdims=True)
    z = s - m
    if bf16_exp:
        p = jnp.exp(z.astype(jnp.bfloat16)).astype(jnp.float32)
    else:
        p = jnp.exp(z)
    denom = jnp.sum(p, axis=-1, keepdims=True)
    attn = p * pl.reciprocal(denom, approx=False)   # exact, parity with torch softmax

    attn_lo = attn.astype(v.dtype)                  # cast once, reuse for store + PV
    attn_ref[0] = attn_lo.astype(attn_ref.dtype)
    ctx_ref[0] = jnp.dot(attn_lo, v,
                         preferred_element_type=jnp.float32).astype(ctx_ref.dtype)


def _sdpa_kernel_nomask(q_ref, k_ref, v_ref, ctx_ref, attn_ref, *, scale, bf16_exp):
    _sdpa_body(q_ref, k_ref, v_ref, None, ctx_ref, attn_ref,
               scale=scale, bf16_exp=bf16_exp)


def _sdpa_kernel_mask(q_ref, k_ref, v_ref, m_ref, ctx_ref, attn_ref, *, scale, bf16_exp):
    _sdpa_body(q_ref, k_ref, v_ref, m_ref, ctx_ref, attn_ref,
               scale=scale, bf16_exp=bf16_exp)


def _flash_body(q_ref, k_ref, v_ref, m_ref, o_ref, m_sc, l_sc, acc_sc,
                *, scale, bf16_exp):
    kv = pl.program_id(2)

    @pl.when(kv == 0)
    def _():
        m_sc[...] = jnp.full_like(m_sc, _NEG_INF)
        l_sc[...] = jnp.zeros_like(l_sc)
        acc_sc[...] = jnp.zeros_like(acc_sc)

    q = q_ref[0]
    if scale is not None:
        q = q * jnp.asarray(scale, dtype=q.dtype)

    s = lax.dot_general(q, k_ref[0], dimension_numbers=(((1,), (1,)), ((), ())),
                        preferred_element_type=jnp.float32)
    if m_ref is not None:
        # finite mask value so partially-masked key blocks never poison the running max
        s = jnp.where(m_ref[0] != 0, _NEG_INF, s)

    m_prev = m_sc[...]
    m_new = jnp.maximum(m_prev, jnp.max(s, axis=-1, keepdims=True))
    alpha = jnp.exp(m_prev - m_new)
    z = s - m_new
    if bf16_exp:
        p = jnp.exp(z.astype(jnp.bfloat16)).astype(jnp.float32)
    else:
        p = jnp.exp(z)
    l_sc[...] = alpha * l_sc[...] + jnp.sum(p, axis=-1, keepdims=True)
    acc_sc[...] = alpha * acc_sc[...] + jnp.dot(
        p.astype(v_ref.dtype), v_ref[0], preferred_element_type=jnp.float32)
    m_sc[...] = m_new

    @pl.when(kv == pl.num_programs(2) - 1)
    def _():
        o_ref[0] = (acc_sc[...] * pl.reciprocal(l_sc[...], approx=False)
                    ).astype(o_ref.dtype)


def _flash_kernel_nomask(q_ref, k_ref, v_ref, o_ref, m_sc, l_sc, acc_sc,
                         *, scale, bf16_exp):
    _flash_body(q_ref, k_ref, v_ref, None, o_ref, m_sc, l_sc, acc_sc,
                scale=scale, bf16_exp=bf16_exp)


def _flash_kernel_mask(q_ref, k_ref, v_ref, m_ref, o_ref, m_sc, l_sc, acc_sc,
                       *, scale, bf16_exp):
    _flash_body(q_ref, k_ref, v_ref, m_ref, o_ref, m_sc, l_sc, acc_sc,
                scale=scale, bf16_exp=bf16_exp)


def scaled_dot_product_attention(q, k, v, scale=None, attn_mask=None,
                                 return_attention=True):
    """q: [BH, Lq, D], k: [BH, Lk, D], v: [BH, Lk, Dv].

    attn_mask may be [BH, Lq, Lk] or [B, Lq, Lk] (broadcast replica-major across
    heads via `bh % B`, matching torch's attn_mask.repeat(num_heads, 1, 1)).

    Returns (context [BH, Lq, Dv], attention [BH, Lq, Lk] or None) in q.dtype.
    """
    BH, Lq, D = q.shape
    _, Lk, Dk = k.shape
    _, Lv, Dv = v.shape
    assert Dk == D and Lv == Lk

    esz = jnp.dtype(q.dtype).itemsize
    budget = _vmem_budget_bytes()
    v5e = _is_v5e()
    bf16_exp = (q.dtype == jnp.bfloat16) and not v5e   # bf16 EUP only on v6e/v7x
    has_mask = attn_mask is not None
    mask8 = attn_mask.astype(jnp.int8) if has_mask else None
    mask_b = mask8.shape[0] if has_mask else 1

    if return_attention:
        # ---------- full-row softmax; exports the attention matrix ----------
        # K/V are single-buffered (index invariant across the inner Lq axis).
        fixed = Lk * (D + Dv) * esz + (2 << 20)
        per_row = (2 * D * esz          # q (double-buffered)
                   + 2 * Dv * esz       # ctx out (double-buffered)
                   + 2 * Lk * esz       # attn out (double-buffered)
                   + 3 * Lk * 4)        # f32 s / p / attn intermediates
        if has_mask:
            per_row += 2 * Lk           # int8 mask
        tq = _choose_q_tile(Lq, per_row, fixed, budget, prefer_small=v5e)
        gq = pl.cdiv(Lq, tq)

        kv_mode = pl.Buffered(1)
        in_specs = [
            pl.BlockSpec((1, tq, D), lambda b, i: (b, i, 0)),
            pl.BlockSpec((1, Lk, D), lambda b, i: (b, 0, 0), pipeline_mode=kv_mode),
            pl.BlockSpec((1, Lk, Dv), lambda b, i: (b, 0, 0), pipeline_mode=kv_mode),
        ]
        inputs = [q, k, v]
        if has_mask:
            in_specs.append(
                pl.BlockSpec((1, tq, Lk), lambda b, i: (b % mask_b, i, 0)))
            inputs.append(mask8)
            kernel = functools.partial(_sdpa_kernel_mask, scale=scale,
                                       bf16_exp=bf16_exp)
        else:
            kernel = functools.partial(_sdpa_kernel_nomask, scale=scale,
                                       bf16_exp=bf16_exp)

        vmem_limit = int(min(budget, max(fixed + tq * per_row, 32 << 20)))

        context, attention = pl.pallas_call(
            kernel,
            out_shape=(
                jax.ShapeDtypeStruct((BH, Lq, Dv), q.dtype),
                jax.ShapeDtypeStruct((BH, Lq, Lk), q.dtype),
            ),
            grid_spec=pltpu.PrefetchScalarGridSpec(
                num_scalar_prefetch=0,
                grid=(BH, gq),
                in_specs=in_specs,
                out_specs=[
                    pl.BlockSpec((1, tq, Dv), lambda b, i: (b, i, 0)),
                    pl.BlockSpec((1, tq, Lk), lambda b, i: (b, i, 0)),
                ],
            ),
            compiler_params=pltpu.CompilerParams(
                dimension_semantics=("parallel", "parallel"),
                vmem_limit_bytes=vmem_limit,
            ),
        )(*inputs)
        return context, attention

    # ---------- context-only flash path: Lk-tiled online softmax ----------
    tk, gk = _pick_exact_tile(Lk)
    fixed = 2 * tk * (D + Dv) * esz + (2 << 20)
    per_row = (2 * D * esz          # q
               + 2 * Dv * esz       # ctx out
               + 2 * tk * 4         # f32 s / p
               + 4 * Dv + 1024)     # acc / m / l scratch (lane-padded)
    if has_mask:
        per_row += 2 * tk
    tq = _choose_q_tile(Lq, per_row, fixed, budget, prefer_small=v5e)
    gq = pl.cdiv(Lq, tq)

    in_specs = [
        pl.BlockSpec((1, tq, D), lambda b, i, kk: (b, i, 0)),
        pl.BlockSpec((1, tk, D), lambda b, i, kk: (b, kk, 0)),
        pl.BlockSpec((1, tk, Dv), lambda b, i, kk: (b, kk, 0)),
    ]
    inputs = [q, k, v]
    if has_mask:
        in_specs.append(
            pl.BlockSpec((1, tq, tk), lambda b, i, kk: (b % mask_b, i, kk)))
        inputs.append(mask8)
        kernel = functools.partial(_flash_kernel_mask, scale=scale, bf16_exp=bf16_exp)
    else:
        kernel = functools.partial(_flash_kernel_nomask, scale=scale, bf16_exp=bf16_exp)

    vmem_limit = int(min(budget, max(fixed + tq * per_row, 32 << 20)))

    context = pl.pallas_call(
        kernel,
        out_shape=jax.ShapeDtypeStruct((BH, Lq, Dv), q.dtype),
        grid_spec=pltpu.PrefetchScalarGridSpec(
            num_scalar_prefetch=0,
            grid=(BH, gq, gk),
            in_specs=in_specs,
            out_specs=pl.BlockSpec((1, tq, Dv), lambda b, i, kk: (b, i, 0)),
            scratch_shapes=[
                pltpu.VMEM((tq, 1), jnp.float32),
                pltpu.VMEM((tq, 1), jnp.float32),
                pltpu.VMEM((tq, Dv), jnp.float32),
            ],
        ),
        compiler_params=pltpu.CompilerParams(
            dimension_semantics=("parallel", "parallel", "arbitrary"),
            vmem_limit_bytes=vmem_limit,
        ),
    )(*inputs)
    return context, None


# --------------------------------------------------------------------------
# fused final linear + residual + LayerNorm kernel (din K-tiled accumulator)
# --------------------------------------------------------------------------
def _out_ln_kernel(x_ref, w_ref, b_ref, r_ref, g_ref, be_ref, o_ref, acc_ref, *, eps):
    k = pl.program_id(1)

    @pl.when(k == 0)
    def _():
        acc_ref[...] = jnp.zeros_like(acc_ref)

    acc_ref[...] += jnp.dot(x_ref[...], w_ref[...], preferred_element_type=jnp.float32)

    @pl.when(k == pl.num_programs(1) - 1)
    def _():
        y = acc_ref[...] + b_ref[...].astype(jnp.float32) + r_ref[...].astype(jnp.float32)
        mu = jnp.mean(y, axis=-1, keepdims=True)
        var = jnp.mean(jnp.square(y - mu), axis=-1, keepdims=True)
        inv = lax.rsqrt(var + eps)
        o = (y - mu) * inv * g_ref[...].astype(jnp.float32) + be_ref[...].astype(jnp.float32)
        o_ref[...] = o.astype(o_ref.dtype)


def final_proj_residual_layernorm(x, w, b, resid, gamma, beta, eps=1e-5):
    B, L, din = x.shape
    dout = w.shape[1]
    rows = B * L
    x2 = x.reshape(rows, din)
    r2 = resid.reshape(rows, dout)

    tr, gr = _pick_row_tile(rows)
    tk, gk = _pick_exact_tile(din)

    esz = jnp.dtype(x.dtype).itemsize
    est = (2 * tr * tk * esz + 2 * tk * dout * esz + 4 * tr * dout * esz
           + 2 * tr * dout * 4 + 8 * dout * esz + (2 << 20))
    budget = _vmem_budget_bytes()
    vmem_limit = int(min(budget, max(est, 32 << 20)))

    out = pl.pallas_call(
        functools.partial(_out_ln_kernel, eps=eps),
        out_shape=jax.ShapeDtypeStruct((rows, dout), x.dtype),
        grid_spec=pltpu.PrefetchScalarGridSpec(
            num_scalar_prefetch=0,
            grid=(gr, gk),
            in_specs=[
                pl.BlockSpec((tr, tk), lambda i, k: (i, k)),
                pl.BlockSpec((tk, dout), lambda i, k: (k, 0)),
                pl.BlockSpec((1, dout), lambda i, k: (0, 0)),
                pl.BlockSpec((tr, dout), lambda i, k: (i, 0)),
                pl.BlockSpec((1, dout), lambda i, k: (0, 0)),
                pl.BlockSpec((1, dout), lambda i, k: (0, 0)),
            ],
            out_specs=pl.BlockSpec((tr, dout), lambda i, k: (i, 0)),
            scratch_shapes=[pltpu.VMEM((tr, dout), jnp.float32)],
        ),
        compiler_params=pltpu.CompilerParams(
            dimension_semantics=("parallel", "arbitrary"),
            vmem_limit_bytes=vmem_limit,
        ),
    )(x2, w, b.reshape(1, dout), r2, gamma.reshape(1, dout), beta.reshape(1, dout))
    return out.reshape(B, L, dout)


# --------------------------------------------------------------------------
# MultiHeadAttention.forward
# --------------------------------------------------------------------------
def init_params(key, model_dim, num_heads):
    d = model_dim // num_heads
    keys = jax.random.split(key, 8)
    bound = 1.0 / (model_dim ** 0.5)

    def u(k, shape):
        return jax.random.uniform(k, shape, jnp.float32, -bound, bound)

    return dict(
        num_heads=num_heads,
        Wq=u(keys[0], (model_dim, num_heads * d)), bq=u(keys[1], (num_heads * d,)),
        Wk=u(keys[2], (model_dim, num_heads * d)), bk=u(keys[3], (num_heads * d,)),
        Wv=u(keys[4], (model_dim, num_heads * d)), bv=u(keys[5], (num_heads * d,)),
        Wf=u(keys[6], (num_heads * d, model_dim)), bf=u(keys[7], (model_dim,)),
        gamma=jnp.ones((model_dim,), jnp.float32),
        beta=jnp.zeros((model_dim,), jnp.float32),
    )


def multi_head_attention(params, query, key, value, attn_mask=None,
                         return_attention=True):
    """Pallas-backed MultiHeadAttention.forward.

    Returns (output [B, Lq, model_dim], attention [B*h, Lq, Lk] or None).
    dropout p=0.0 in the reference defaults -> identity, omitted.
    """
    B, Lq, model_dim = query.shape
    h = params["num_heads"]
    d = model_dim // h
    residual_in = query

    key_p = linear(key, params["Wk"], params["bk"])
    value_p = linear(value, params["Wv"], params["bv"])
    query_p = linear(query, params["Wq"], params["bq"])

    # Matches torch's raw .view(batch*heads, -1, dim_per_head) (row-major reshape).
    key_p = key_p.reshape(B * h, -1, d)
    value_p = value_p.reshape(B * h, -1, d)
    query_p = query_p.reshape(B * h, -1, d)

    # Matches the reference scale logic: key.size(-1) // num_heads, else 0.5.
    scale = d // h if (d // h) > 0 else 0.5

    # attn_mask stays (B, Lq, Lk); the replica-major head mapping (torch repeat)
    # is folded into the kernel's mask index_map (bh % B) -> no hx-tiled mask in HBM.
    context, attention = scaled_dot_product_attention(
        query_p, key_p, value_p, scale=scale, attn_mask=attn_mask,
        return_attention=return_attention,
    )

    context = context.reshape(B, -1, d * h)
    output = final_proj_residual_layernorm(
        context, params["Wf"], params["bf"], residual_in,
        params["gamma"], params["beta"],
    )
    return output, attention


# --------------------------------------------------------------------------
# pure-JAX reference (exact softmax / divide) for validation
# --------------------------------------------------------------------------
def _reference_mha(params, query, key, value, attn_mask=None):
    B, Lq, model_dim = query.shape
    h = params["num_heads"]
    d = model_dim // h
    resid = query
    k_p = (key @ params["Wk"] + params["bk"]).reshape(B * h, -1, d)
    v_p = (value @ params["Wv"] + params["bv"]).reshape(B * h, -1, d)
    q_p = (query @ params["Wq"] + params["bq"]).reshape(B * h, -1, d)
    scale = d // h if (d // h) > 0 else 0.5
    s = jnp.einsum("bqd,bkd->bqk", q_p, k_p).astype(jnp.float32) * scale
    if attn_mask is not None:
        mask = jnp.tile(attn_mask, (h, 1, 1))
        s = jnp.where(mask, -jnp.inf, s)
    attn = jax.nn.softmax(s, axis=-1)
    ctx = jnp.einsum("bqk,bkd->bqd", attn, v_p.astype(jnp.float32))
    ctx = ctx.reshape(B, -1, h * d)
    out = ctx @ params["Wf"] + params["bf"] + resid
    mu = out.mean(-1, keepdims=True)
    var = ((out - mu) ** 2).mean(-1, keepdims=True)
    out = (out - mu) * lax.rsqrt(var + 1e-5) * params["gamma"] + params["beta"]
    return out.astype(query.dtype), attn


if __name__ == "__main__":
    root = jax.random.PRNGKey(0)
    ks = jax.random.split(root, 5)

    B, L, model_dim, num_heads = 2, 8, 32, 4
    query = jax.random.normal(ks[0], (B, L, model_dim), dtype=jnp.float32)
    key_in = jax.random.normal(ks[1], (B, L, model_dim), dtype=jnp.float32)
    value_in = jax.random.normal(ks[2], (B, L, model_dim), dtype=jnp.float32)
    # Mask out a few (query, key) positions, but never a full row.
    attn_mask = jax.random.bernoulli(ks[3], p=0.2, shape=(B, L, L))
    attn_mask = attn_mask.at[:, :, 0].set(False)

    params = init_params(ks[4], model_dim, num_heads)

    out_ref, attn_ref = _reference_mha(params, query, key_in, value_in, attn_mask)
    out_ref_nm, _ = _reference_mha(params, query, key_in, value_in, None)

    # 1) module default: masked, attention matrix returned
    out, attn = multi_head_attention(params, query, key_in, value_in, attn_mask)
    jax.block_until_ready((out, attn))
    assert out.shape == (B, L, model_dim)
    assert attn.shape == (B * num_heads, L, L)
    assert jnp.allclose(attn, attn_ref.astype(attn.dtype), atol=2e-3, rtol=2e-3)
    assert jnp.allclose(out, out_ref, atol=2e-2, rtol=2e-2)

    # 2) masked, context-only (flash / Lk-tiled) path
    out_f, attn_none = multi_head_attention(params, query, key_in, value_in, attn_mask,
                                            return_attention=False)
    jax.block_until_ready(out_f)
    assert attn_none is None
    assert jnp.allclose(out_f, out_ref, atol=2e-2, rtol=2e-2)

    # 3) unmasked, attention matrix returned
    out_nm, attn_nm = multi_head_attention(params, query, key_in, value_in, None)
    jax.block_until_ready((out_nm, attn_nm))
    assert jnp.allclose(out_nm, out_ref_nm, atol=2e-2, rtol=2e-2)

    # 4) unmasked, context-only (flash) path
    out_nm_f, _ = multi_head_attention(params, query, key_in, value_in, None,
                                       return_attention=False)
    jax.block_until_ready(out_nm_f)
    assert jnp.allclose(out_nm_f, out_ref_nm, atol=2e-2, rtol=2e-2)

    print("KERNEL_OK")
</pallas_src>

<mosaic_0001>
module attributes {stable_mosaic.version = 11 : i64} {
  func.func @_linear_kernel(%arg0: i32, %arg1: i32, %arg2: memref<16x32xf32, #tpu.memory_space<vmem>>, %arg3: memref<32x32xf32, #tpu.memory_space<vmem>>, %arg4: memref<1x32xf32, #tpu.memory_space<vmem>>, %arg5: memref<16x32xf32, #tpu.memory_space<vmem>>) attributes {dimension_semantics = [#tpu.dimension_semantics<parallel>, #tpu.dimension_semantics<parallel>], iteration_bounds = array<i64: 1, 1>, scalar_prefetch = 0 : i64, scratch_operands = 0 : i64, tpu.core_type = #tpu.core_type<tc>, window_params = [{transform_indices = @transform_0, window_bounds = array<i64: 16, 32>}, {transform_indices = @transform_1, window_bounds = array<i64: 32, 32>}, {transform_indices = @transform_2, window_bounds = array<i64: 1, 32>}, {transform_indices = @transform_3, window_bounds = array<i64: 16, 32>}]} {
    %c0 = arith.constant 0 : index
    %c0_0 = arith.constant 0 : index
    %0 = vector.load %arg2[%c0, %c0_0] : memref<16x32xf32, #tpu.memory_space<vmem>>, vector<16x32xf32>
    %c0_1 = arith.constant 0 : index
    %c0_2 = arith.constant 0 : index
    %1 = vector.load %arg3[%c0_1, %c0_2] : memref<32x32xf32, #tpu.memory_space<vmem>>, vector<32x32xf32>
    %cst = arith.constant dense<0.000000e+00> : vector<16x32xf32>
    %2 = tpu.matmul %0, %1, %cst {dimension_numbers = #tpu.dot_dimension_numbers<[1], [0], [0], [1], [0, 0, 1, 1], [], []>} : vector<16x32xf32>, vector<32x32xf32>, vector<16x32xf32> -> vector<16x32xf32>
    %c0_3 = arith.constant 0 : index
    %c0_4 = arith.constant 0 : index
    %3 = vector.load %arg4[%c0_3, %c0_4] : memref<1x32xf32, #tpu.memory_space<vmem>>, vector<1x32xf32>
    %4 = vector.broadcast %3 : vector<1x32xf32> to vector<16x32xf32>
    %5 = arith.addf %2, %4 : vector<16x32xf32>
    %c0_5 = arith.constant 0 : index
    %c0_6 = arith.constant 0 : index
    %6 = vector.load %arg5[%c0_5, %c0_6] : memref<16x32xf32, #tpu.memory_space<vmem>>, vector<16x32xf32>
    tpu.vector_store %arg5[%c0_5, %c0_6], %5 {strides = array<i32>} : memref<16x32xf32, #tpu.memory_space<vmem>>, vector<16x32xf32>,
    return
  }
  func.func @transform_0(%arg0: i32, %arg1: i32) -> (i32, i32) {
    %c0_i32 = arith.constant 0 : i32
    %c0_i32_0 = arith.constant 0 : i32
    return %arg0, %c0_i32 : i32, i32
  }
  func.func @transform_1(%arg0: i32, %arg1: i32) -> (i32, i32) {
    %c0_i32 = arith.constant 0 : i32
    %c0_i32_0 = arith.constant 0 : i32
    return %c0_i32, %arg1 : i32, i32
  }
  func.func @transform_2(%arg0: i32, %arg1: i32) -> (i32, i32) {
    %c0_i32 = arith.constant 0 : i32
    %c0_i32_0 = arith.constant 0 : i32
    return %c0_i32, %arg1 : i32, i32
  }
  func.func @transform_3(%arg0: i32, %arg1: i32) -> (i32, i32) {
    %c0_i32 = arith.constant 0 : i32
    return %arg0, %arg1 : i32, i32
  }
}

</mosaic_0001>

<llo_original>
// kernel: tpu_custom_call.1
$region0: #{tpu_custom_call.1}
  #allocation0 [shape = 'u32[]', space=smem, size = 0x4, offset = 0x4, fixed_abs, tag = 'smem constant byte address 0x4 - core index']
  #allocation1 [shape = 'u32[72,128]{1,0:T(1,128)}', space=vmem, size = 0x9000, scoped, tag = 'internal scratch']
  %s0 = inlined_call_operand.hbm [shape: f32[16,32], index: 0, kind: input, shape index: {}]
  %s1 = inlined_call_operand.hbm [shape: f32[32,32], index: 1, kind: input, shape index: {}]
  %s2 = inlined_call_operand.vmem [shape: f32[1,32], index: 2, kind: input, shape index: {}]
  %s3 = inlined_call_operand.hbm [shape: f32[16,32], index: 3, kind: output, shape index: {}]
  %s4 = sld [smem:[#allocation0]]
  $region30: #{tpu_custom_call.1} parent=0
    _
  %s6 = ssub.s32 1, %s4
  %s7 = scalar_select 0, %s6, %s4
  $region1: #{tpu_custom_call.1} parent=0
    #allocation2 [shape = 'u8[8192]{0}', space=vmem, size = 0x2000, scoped, tag = 'input window, operand 0, single buffered']
    #allocation3 [shape = 's32[1]{0}', space=sflag, size = 0x4, scoped, tag = 'scoped memory for tpu_custom_call.1']
    #allocation4 [shape = 's32[1]{0}', space=sflag, size = 0x4, scoped, tag = 'scoped memory for tpu_custom_call.1']
    #allocation5 [shape = 'u8[16384]{0}', space=vmem, size = 0x4000, scoped, tag = 'input window, operand 1, single buffered']
    #allocation6 [shape = 's32[1]{0}', space=sflag, size = 0x4, scoped, tag = 'scoped memory for tpu_custom_call.1']
    #allocation7 [shape = 'u8[8192]{0}', space=vmem, size = 0x2000, scoped, tag = 'output window, operand 0, single buffered']
    %8 = vsyncpa [#allocation3], 0
    %9 = vsyncpa [#allocation6], 0
    %10 = vsyncpa [#allocation4], 0
    // Predicated region
    $region2: #{tpu_custom_call.1} parent=1 // pred_check
      _
    $region3: #{tpu_custom_call.1} parent=1 // pred_check_branch
      %12 = sbr.rel (0) target = $region5
    $region4: #{tpu_custom_call.1} parent=1 // pred_region
      %14 = vsyncadd [#allocation3], 0
      %s15 = sshll.u32 %s0, 4
      %s16 = int_to_ptr.hbm [resolvable:$true] %s15
      %s17 = sshll.u32 [#allocation2], 4
      %s18 = int_to_ptr.vmem [resolvable:$true] %s17
      %23 = dma.hbm_to_vmem [thread:$0]  %s16, 256, %s18, [#allocation3], 128, 128, 8
    $region5: #{tpu_custom_call.1} parent=1 // pred_fallthru
      _
    // Predicated region
    $region6: #{tpu_custom_call.1} parent=1 // pred_check
      _
    $region7: #{tpu_custom_call.1} parent=1 // pred_check_branch
      %25 = sbr.rel (0) target = $region9
    $region8: #{tpu_custom_call.1} parent=1 // pred_region
      %27 = vsyncadd [#allocation6], 0
      %s28 = sshll.u32 %s1, 4
      %s29 = int_to_ptr.hbm [resolvable:$true] %s28
      %s30 = sshll.u32 [#allocation5], 4
      %s31 = int_to_ptr.vmem [resolvable:$true] %s30
      %36 = dma.hbm_to_vmem [thread:$0]  %s29, 512, %s31, [#allocation6], 128, 128, 8
    $region9: #{tpu_custom_call.1} parent=1 // pred_fallthru
      _
    // Predicated region
    $region10: #{tpu_custom_call.1} parent=1 // pred_check
      _
    $region11: #{tpu_custom_call.1} parent=1 // pred_check_branch
      %38 = sbr.rel (0) target = $region13
    $region12: #{tpu_custom_call.1} parent=1 // pred_region
      _
    $region13: #{tpu_custom_call.1} parent=1 // pred_fallthru
      _
    // Predicated region
    $region14: #{tpu_custom_call.1} parent=1 // pred_check
      _
    $region15: #{tpu_custom_call.1} parent=1 // pred_check_branch
      %40 = sbr.rel (0) target = $region17
    $region16: #{tpu_custom_call.1} parent=1 // pred_region
      %42 = dma.done [#allocation3], 256
    $region17: #{tpu_custom_call.1} parent=1 // pred_fallthru
      _
    // Predicated region
    $region18: #{tpu_custom_call.1} parent=1 // pred_check
      _
    $region19: #{tpu_custom_call.1} parent=1 // pred_check_branch
      %44 = sbr.rel (0) target = $region21
    $region20: #{tpu_custom_call.1} parent=1 // pred_region
      %46 = dma.done [#allocation6], 512
    $region21: #{tpu_custom_call.1} parent=1 // pred_fallthru
      _
    %v47 = vld [vmem:[#allocation2] sm:$0xff]
    %v48 = vld [vmem:[#allocation2 + $0x8] sm:$0xff]
    %v49 = vld [vmem:[#allocation5] sm:$0xff]
    %v50 = vld [vmem:[#allocation5 + $0x8] sm:$0xff]
    %v51 = vld [vmem:[#allocation5 + $0x10] sm:$0xff]
    %v52 = vld [vmem:[#allocation5 + $0x18] sm:$0xff]
    %v53 = vld [vmem:[%s2] sm:$0x1]
    %v55 = vperm.slane %v53, 0
    %vm57 = vcmask 261120
    %v59 = vsel %vm57, %v47, 0
    %v62 = vsel %vm57, %v48, 0
    %64 = vmatpush.msra.mxu0 0.0
    %65 = vmatpush.msra.mxu0 0.0
    %66 = vmatpush.msra.mxu0 0.0
    %67 = vmatpush.msra.mxu0 0.0
    %68 = vmatpush.msra.mxu0 0.0
    %69 = vmatpush.msra.mxu0 0.0
    %70 = vmatpush.msra.mxu0 0.0
    %71 = vmatpush.msra.mxu0 0.0
    %72 = vmatpush.msra.mxu0 0.0
    %73 = vmatpush.msra.mxu0 0.0
    %74 = vmatpush.msra.mxu0 0.0
    %75 = vmatpush.msra.mxu0 0.0
    %76 = vmatpush.msra.mxu0 %v52
    %77 = vmatpush.msra.mxu0 %v51
    %78 = vmatpush.msra.mxu0 %v50
    %79 = vmatpush.msra.mxu0 %v49
    %80 = vmatmul.f32.gmra.mxu0 %v59
    %v81 = vpop.f32.mrf.mxu0
    %v82 = vadd.f32 %v55, %v81
    %83 = vmatmul.f32.gmra.mxu0 %v62
    %v84 = vpop.f32.mrf.mxu0
    %v85 = vadd.f32 %v55, %v84
    %86 = vdwg.mxu0
    %87 = vst.msk [vmem:[#allocation7] sm:$0xff] %vm57, %v82
    %88 = vst.msk [vmem:[#allocation7 + $0x8] sm:$0xff] %vm57, %v85
    // Predicated region
    $region22: #{tpu_custom_call.1} parent=1 // pred_check
      _
    $region23: #{tpu_custom_call.1} parent=1 // pred_check_branch
      %90 = sbr.rel (0) target = $region25
    $region24: #{tpu_custom_call.1} parent=1 // pred_region
      %92 = vsyncadd [#allocation4], 0
      %s93 = sshll.u32 [#allocation7], 4
      %s94 = int_to_ptr.vmem [resolvable:$true] %s93
      %s95 = sshll.u32 %s3, 4
      %s96 = int_to_ptr.hbm [resolvable:$true] %s95
      %101 = dma.vmem_to_hbm [thread:$0]  %s94, 256, %s96, [#allocation4], 128, 128, 8
    $region25: #{tpu_custom_call.1} parent=1 // pred_fallthru
      _
    // Predicated region
    $region26: #{tpu_custom_call.1} parent=1 // pred_check
      _
    $region27: #{tpu_custom_call.1} parent=1 // pred_check_branch
      %103 = sbr.rel (0) target = $region29
    $region28: #{tpu_custom_call.1} parent=1 // pred_region
      %105 = dma.done [#allocation4], 256
    $region29: #{tpu_custom_call.1} parent=1 // pred_fallthru
      _
    %106 = vsyncpa [#allocation3], 1
    %107 = vsyncpa [#allocation6], 1
    %108 = vsyncpa [#allocation4], 1

</llo_original>
